<compile_context>
chip_gen: v6e
topology: v6e:2x2x1
jax: 0.10.0
libtpu: 0.0.40
codegen_flags: <defaults>
</compile_context>

<pallas_src>
from functools import partial

import jax
import jax.numpy as jnp
from jax.experimental import pallas as pl
from jax.experimental.pallas import tpu as pltpu


# ----------------------------- config (mirrors the PyTorch config) ----------
class ReLUMaxConfig:
    relumax_divisor = 8.0
    div_by_seq_len = True


# ----------------------------- Pallas kernel --------------------------------
def _relumax_kernel(x_ref, o_ref, *, scale):
    # Pure elementwise: one max + one mul per element, in the input dtype
    # (Python-float `scale` is weakly typed so bf16 stays bf16).
    x = x_ref[...]
    o_ref[...] = (jnp.maximum(x, 0) * scale).astype(o_ref.dtype)


# ----------------------------- block sizing ----------------------------------
def _default_block_bytes():
    """Generation-specific row-tile target (bytes per block, per operand)."""
    try:
        kind = jax.devices()[0].device_kind.lower()
    except Exception:
        return 2 << 20
    if "v5" in kind:
        return 2 << 20   # v5e: ~820 GB/s HBM -> 2 MiB already hides step overhead; 16 MiB scoped VMEM
    if "v6" in kind:
        return 4 << 20   # v6e: 4x4 MiB double-buffered in+out fits the 32 MiB scoped default
    if "7" in kind:
        return 6 << 20   # v7x: ~3.2 TB/s HBM makes the ~0.35 us/step overhead relatively large
    return 2 << 20


# ----------------------------- wrapper ---------------------------------------
def relumax(x, config: ReLUMaxConfig, dim=-1, target_block_bytes=None):
    """Elementwise ReLUMax.  `dim` only selects the seq-len divisor, exactly as
    in the PyTorch module."""
    orig_shape = x.shape
    orig_dtype = x.dtype
    total = int(x.size)

    # Fold all scalar math into one compile-time constant (one vmul / element).
    scale = 1.0 / float(config.relumax_divisor)
    if config.div_by_seq_len:
        scale = scale / float(orig_shape[dim])

    if not jnp.issubdtype(orig_dtype, jnp.floating):
        # TODO(synk): integer inputs promote to float under torch true-division;
        # handled in plain JAX (no Pallas path needed for this corner).
        r = jnp.maximum(x, 0) / config.relumax_divisor
        if config.div_by_seq_len:
            r = r / orig_shape[dim]
        return r

    # ---- lane-dense slab layout: (rows, lanes), lanes a multiple of 128 ------
    lanes = None
    for cand in (1024, 2048, 512, 4096, 256, 128):
        if total % cand == 0:
            lanes = cand
            break
    if lanes is None:
        # No 128-multiple factorization of the element count: a padded copy +
        # final slice would ~triple HBM traffic around a mem-bound streaming
        # kernel, so use one fused XLA elementwise op (same roofline, no copies).
        # TODO(synk): in-kernel masked tail (pltpu.store + lane mask) if a
        # fully-Pallas path is ever needed for odd element counts.
        return (jnp.maximum(x, 0) * scale).astype(orig_dtype)

    rows = total // lanes
    x2 = x.reshape(rows, lanes)

    # ---- row tile -------------------------------------------------------------
    if target_block_bytes is None:
        target_block_bytes = _default_block_bytes()
    itemsize = jnp.dtype(orig_dtype).itemsize
    sub = 32 if itemsize == 1 else (16 if itemsize == 2 else 8)   # sublane pack

    br = max(sub, (target_block_bytes // (lanes * itemsize)) // sub * sub)

    # Guarantee >= 2 grid steps when rows allow it, so the "parallel" axis can
    # shard across v7x's 2 TensorCores (harmless on 1-TC v5e/v6e).
    if rows >= 2 * sub:
        half = max(sub, (pl.cdiv(rows, 2) // sub) * sub)
        br = min(br, half)
    br = min(br, rows)   # br == rows -> full dim; br < rows -> multiple of sub

    # Prefer a br that divides rows so the last block stays a full unmasked
    # store, but never shrink the tile by more than ~2x for it (minor win).
    if rows % br != 0 and br > sub:
        for d in range(br, max(sub, br // 2) - 1, -sub):
            if rows % d == 0:
                br = d
                break

    grid = (pl.cdiv(rows, br),)

    # Cover the double-buffered in+out pipeline (~4x block) with headroom; well
    # under physical VMEM on every generation (v7x: 64 MiB/TC).
    vmem_limit = min(48 << 20, 4 * br * lanes * itemsize + (8 << 20))

    kernel = partial(_relumax_kernel, scale=float(scale))

    out2 = pl.pallas_call(
        kernel,
        out_shape=jax.ShapeDtypeStruct((rows, lanes), orig_dtype),
        grid_spec=pltpu.PrefetchScalarGridSpec(
            num_scalar_prefetch=0,
            grid=grid,
            in_specs=[pl.BlockSpec((br, lanes), lambda i: (i, 0))],
            out_specs=pl.BlockSpec((br, lanes), lambda i: (i, 0)),
        ),
        compiler_params=pltpu.CompilerParams(
            dimension_semantics=("parallel",),
            vmem_limit_bytes=vmem_limit,
        ),
    )(x2)

    return out2.reshape(orig_shape)


# ----------------------------- reference (plain JAX) -------------------------
def relumax_ref(x, config: ReLUMaxConfig, dim=-1):
    result = jnp.maximum(x, 0) / config.relumax_divisor
    if config.div_by_seq_len:
        result = result / x.shape[dim]
    return result.astype(x.dtype)


# ----------------------------- main ------------------------------------------
if __name__ == "__main__":
    config = ReLUMaxConfig()
    key = jax.random.PRNGKey(0)

    # small attention-score-like input: (batch=2, heads=4, seq=16, seq=16)
    x = jax.random.normal(key, (2, 4, 16, 16), dtype=jnp.float32) * 4.0
    out = jax.block_until_ready(relumax(x, config, dim=-1))
    ref = relumax_ref(x, config, dim=-1)
    assert out.shape == x.shape and out.dtype == x.dtype
    assert jnp.allclose(out, ref, rtol=1e-5, atol=1e-6), "f32 mismatch vs reference"

    # bf16 path: compute stays native bf16 inside the kernel (v6e/v7x VPUs).
    xb = (jax.random.normal(key, (2, 4, 16, 32), dtype=jnp.float32) * 4.0).astype(jnp.bfloat16)
    outb = jax.block_until_ready(relumax(xb, config, dim=-1))
    refb = relumax_ref(xb, config, dim=-1)
    assert outb.shape == xb.shape and outb.dtype == jnp.bfloat16
    assert jnp.allclose(outb.astype(jnp.float32), refb.astype(jnp.float32),
                        rtol=2e-2, atol=1e-3), "bf16 mismatch vs reference"

    print("KERNEL_OK")
</pallas_src>

<mosaic_0001>
module attributes {stable_mosaic.version = 11 : i64} {
  func.func @_relumax_kernel(%arg0: i32, %arg1: memref<2x1024xf32, #tpu.memory_space<vmem>>, %arg2: memref<2x1024xf32, #tpu.memory_space<vmem>>) attributes {dimension_semantics = [#tpu.dimension_semantics<parallel>], iteration_bounds = array<i64: 1>, scalar_prefetch = 0 : i64, scratch_operands = 0 : i64, tpu.core_type = #tpu.core_type<tc>, window_params = [{transform_indices = @transform_0, window_bounds = array<i64: 2, 1024>}, {transform_indices = @transform_1, window_bounds = array<i64: 2, 1024>}]} {
    %c0 = arith.constant 0 : index
    %c0_0 = arith.constant 0 : index
    %0 = vector.load %arg1[%c0, %c0_0] : memref<2x1024xf32, #tpu.memory_space<vmem>>, vector<2x1024xf32>
    %cst = arith.constant 0.000000e+00 : f32
    %1 = vector.broadcast %cst : f32 to vector<2x1024xf32>
    %2 = arith.maximumf %0, %1 : vector<2x1024xf32>
    %cst_1 = arith.constant 7.812500e-03 : f32
    %3 = vector.broadcast %cst_1 : f32 to vector<2x1024xf32>
    %4 = arith.mulf %2, %3 : vector<2x1024xf32>
    %c0_2 = arith.constant 0 : index
    %c0_3 = arith.constant 0 : index
    %5 = vector.load %arg2[%c0_2, %c0_3] : memref<2x1024xf32, #tpu.memory_space<vmem>>, vector<2x1024xf32>
    tpu.vector_store %arg2[%c0_2, %c0_3], %4 {strides = array<i32>} : memref<2x1024xf32, #tpu.memory_space<vmem>>, vector<2x1024xf32>,
    return
  }
  func.func @transform_0(%arg0: i32) -> (i32, i32) {
    %c0_i32 = arith.constant 0 : i32
    %c0_i32_0 = arith.constant 0 : i32
    return %arg0, %c0_i32 : i32, i32
  }
  func.func @transform_1(%arg0: i32) -> (i32, i32) {
    %c0_i32 = arith.constant 0 : i32
    %c0_i32_0 = arith.constant 0 : i32
    return %arg0, %c0_i32 : i32, i32
  }
}

</mosaic_0001>

<llo_original>
// kernel: tpu_custom_call.1
$region0: #{tpu_custom_call.1}
  #allocation0 [shape = 'u32[]', space=smem, size = 0x4, offset = 0x4, fixed_abs, tag = 'smem constant byte address 0x4 - core index']
  #allocation1 [shape = 'u32[144,128]{1,0:T(1,128)}', space=vmem, size = 0x12000, scoped, tag = 'internal scratch']
  %s0 = inlined_call_operand.hbm [shape: f32[2,1024], index: 0, kind: input, shape index: {}]
  %s1 = inlined_call_operand.hbm [shape: f32[2,1024], index: 1, kind: output, shape index: {}]
  %s2 = sld [smem:[#allocation0]]
  $region18: #{tpu_custom_call.1} parent=0
    _
  %s4 = ssub.s32 1, %s2
  %s5 = scalar_select 0, %s4, %s2
  $region1: #{tpu_custom_call.1} parent=0
    #allocation2 [shape = 'u8[8192]{0}', space=vmem, size = 0x2000, scoped, tag = 'input window, operand 0, single buffered']
    #allocation3 [shape = 's32[1]{0}', space=sflag, size = 0x4, scoped, tag = 'scoped memory for tpu_custom_call.1']
    #allocation4 [shape = 's32[1]{0}', space=sflag, size = 0x4, scoped, tag = 'scoped memory for tpu_custom_call.1']
    #allocation5 [shape = 'u8[8192]{0}', space=vmem, size = 0x2000, scoped, tag = 'output window, operand 0, single buffered']
    %6 = vsyncpa [#allocation3], 0
    %7 = vsyncpa [#allocation4], 0
    // Predicated region
    $region2: #{tpu_custom_call.1} parent=1 // pred_check
      _
    $region3: #{tpu_custom_call.1} parent=1 // pred_check_branch
      %9 = sbr.rel (0) target = $region5
    $region4: #{tpu_custom_call.1} parent=1 // pred_region
      %s11 = ssub.s32 256, 256
      %12 = vsyncadd [#allocation3], %s11
      %s14 = sshll.u32 [#allocation2], 4
      %s15 = int_to_ptr.vmem [resolvable:$true] %s14
      %17 = dma.hbm_to_vmem [thread:$0]  %s0, 256, %s15, [#allocation3]
    $region5: #{tpu_custom_call.1} parent=1 // pred_fallthru
      _
    // Predicated region
    $region6: #{tpu_custom_call.1} parent=1 // pred_check
      _
    $region7: #{tpu_custom_call.1} parent=1 // pred_check_branch
      %19 = sbr.rel (0) target = $region9
    $region8: #{tpu_custom_call.1} parent=1 // pred_region
      %20 = dma.done [#allocation3], 256
    $region9: #{tpu_custom_call.1} parent=1 // pred_fallthru
      _
    %v21 = vld [vmem:[#allocation2] sm:$0xff]
    %v22 = vld [vmem:[#allocation2 + $0x8] sm:$0xff]
    %v23 = vmax.f32 %v21, 0.0
    %v24 = vmax.f32 %v22, 0.0
    %v25 = vmul.f32 %v23, 0.0078125
    %v26 = vmul.f32 %v24, 0.0078125
    %27 = vst [vmem:[#allocation5] sm:$0xff] %v25
    %28 = vst [vmem:[#allocation5 + $0x8] sm:$0xff] %v26
    // Predicated region
    $region10: #{tpu_custom_call.1} parent=1 // pred_check
      _
    $region11: #{tpu_custom_call.1} parent=1 // pred_check_branch
      %30 = sbr.rel (0) target = $region13
    $region12: #{tpu_custom_call.1} parent=1 // pred_region
      %s32 = ssub.s32 256, 256
      %33 = vsyncadd [#allocation4], %s32
      %s35 = sshll.u32 [#allocation5], 4
      %s36 = int_to_ptr.vmem [resolvable:$true] %s35
      %38 = dma.vmem_to_hbm [thread:$0]  %s36, 256, %s1, [#allocation4]
    $region13: #{tpu_custom_call.1} parent=1 // pred_fallthru
      _
    // Predicated region
    $region14: #{tpu_custom_call.1} parent=1 // pred_check
      _
    $region15: #{tpu_custom_call.1} parent=1 // pred_check_branch
      %40 = sbr.rel (0) target = $region17
    $region16: #{tpu_custom_call.1} parent=1 // pred_region
      %41 = dma.done [#allocation4], 256
    $region17: #{tpu_custom_call.1} parent=1 // pred_fallthru
      _
    %42 = vsyncpa [#allocation3], 1
    %43 = vsyncpa [#allocation4], 1

</llo_original>
